<compile_context>
chip_gen: v6e
topology: v6e:2x2x1
jax: 0.10.0
libtpu: 0.0.40
codegen_flags: <defaults>
</compile_context>

<pallas_src>
import jax
import jax.numpy as jnp
from jax import lax
from jax.experimental import pallas as pl
from jax.experimental.pallas import tpu as pltpu


def _leaky_relu(x, slope=0.1):
    return jnp.where(x >= 0, x, slope * x)


def _freblock_amp_kernel(re_ref, im_ref, w1_ref, b1_ref, w2_ref, b2_ref,
                         ore_ref, oim_ref):
    # mode == 'amplitude': process |x|, keep the phase.
    # Blocks are channel-major / pixel-last: (C, TILE_HW); pixels in lanes.
    re = re_ref[...] + 1e-8              # x + 1e-8 adds to the real part only
    im = im_ref[...]
    msq = re * re + im * im
    inv_mag = lax.rsqrt(msq)             # single EUP op (no sqrt-then-divide)
    mag = msq * inv_mag                  # |x|

    # process(|x|): 1x1 conv -> LeakyReLU(0.1) -> 1x1 conv (channel matmuls,
    # weights on the left so the large pixel tile is the MXU N dimension).
    h = jnp.dot(w1_ref[...], mag, preferred_element_type=jnp.float32) + b1_ref[...]
    h = _leaky_relu(h)
    new_mag = jnp.dot(w2_ref[...], h, preferred_element_type=jnp.float32) + b2_ref[...]

    # real = new_mag*cos(angle), imag = new_mag*sin(angle), using the exact
    # identities cos(angle) = re/|x|, sin(angle) = im/|x|.
    scale = new_mag * inv_mag
    ore_ref[...] = scale * re
    oim_ref[...] = scale * im


def _freblock_pha_kernel(re_ref, im_ref, w1_ref, b1_ref, w2_ref, b2_ref,
                         ore_ref, oim_ref):
    # mode == 'phase': process angle(x), keep the magnitude.
    re = re_ref[...] + 1e-8
    im = im_ref[...]
    msq = re * re + im * im
    mag = msq * lax.rsqrt(msq)           # |x|
    pha = jnp.arctan2(im, re)            # angle(x)
    h = jnp.dot(w1_ref[...], pha, preferred_element_type=jnp.float32) + b1_ref[...]
    h = _leaky_relu(h)
    new_pha = jnp.dot(w2_ref[...], h, preferred_element_type=jnp.float32) + b2_ref[...]
    ore_ref[...] = mag * jnp.cos(new_pha)
    oim_ref[...] = mag * jnp.sin(new_pha)


def _round_up(x, m):
    return ((x + m - 1) // m) * m


def _choose_tile_hw(hw, c, vmem_budget_bytes=8 << 20):
    """Largest pixel tile (multiple of 128) within a conservative VMEM budget.

    Budget: 4 f32 arrays (2 inputs + 2 outputs) x 2 pipeline buffers
            x C x TILE_HW x 4 bytes  <=  vmem_budget_bytes.
    8 MiB keeps us well under the default scoped VMEM limit on v5e/v6e/v7x.
    """
    if hw <= 128:
        return hw                         # full extent satisfies the lane rule
    max_thw = vmem_budget_bytes // (4 * 2 * c * 4)
    thw = min(max_thw, 8192, _round_up(hw, 128))
    return max(128, (thw // 128) * 128)


def fre_block(x_re, x_im, w1, b1, w2, b2, mode="amplitude"):
    """Pallas FreBlock.

    x_re, x_im : (N, C, H, W) float32 real / imaginary parts of the complex input.
    w1, w2     : (C, C, 1, 1) conv weights (PyTorch layout); b1, b2: (C,) biases.
    Returns complex64 array of shape (N, C, H, W).
    """
    N, C, H, W = x_re.shape
    HW = H * W

    # NCHW -> (N, C, H*W): free contiguous view, no transpose / copy / pad.
    re3 = x_re.reshape(N, C, HW)
    im3 = x_im.reshape(N, C, HW)

    # Conv2d(nc, nc, 1) weight (C_out, C_in, 1, 1) -> (C_out, C_in) left-matmul
    # matrix; bias -> (C, 1) so it broadcasts along the pixel (lane) axis.
    w1m = w1[:, :, 0, 0].astype(jnp.float32)
    w2m = w2[:, :, 0, 0].astype(jnp.float32)
    b1m = b1.reshape(C, 1).astype(jnp.float32)
    b2m = b2.reshape(C, 1).astype(jnp.float32)

    if mode == "amplitude":
        kernel = _freblock_amp_kernel
    elif mode == "phase":
        kernel = _freblock_pha_kernel
    else:
        raise ValueError(f"unknown mode: {mode}")

    thw = _choose_tile_hw(HW, C)
    grid = (N, pl.cdiv(HW, thw))          # partial last tile masked by Pallas

    tile_spec = pl.BlockSpec((None, C, thw), lambda n, t: (n, 0, t))
    w_spec = pl.BlockSpec((C, C), lambda n, t: (0, 0))
    b_spec = pl.BlockSpec((C, 1), lambda n, t: (0, 0))

    out_re, out_im = pl.pallas_call(
        kernel,
        out_shape=(jax.ShapeDtypeStruct((N, C, HW), jnp.float32),
                   jax.ShapeDtypeStruct((N, C, HW), jnp.float32)),
        grid=grid,
        in_specs=[tile_spec, tile_spec, w_spec, b_spec, w_spec, b_spec],
        out_specs=(tile_spec, tile_spec),
        compiler_params=pltpu.CompilerParams(
            dimension_semantics=("parallel", "parallel")),
    )(re3, im3, w1m, b1m, w2m, b2m)

    # (N, C, H*W) -> NCHW: free view again.
    out_re = out_re.reshape(N, C, H, W)
    out_im = out_im.reshape(N, C, H, W)
    return lax.complex(out_re, out_im)


def ref_fre_block(x, w1, b1, w2, b2, mode):
    """Pure-JAX reference matching the PyTorch forward exactly."""
    x = x + 1e-8
    mag = jnp.abs(x)
    pha = jnp.angle(x)

    def process(t):  # 1x1 conv -> LeakyReLU(0.1) -> 1x1 conv, NCHW
        t = jnp.transpose(t, (0, 2, 3, 1))
        h = t @ w1[:, :, 0, 0].T + b1
        h = jnp.where(h >= 0, h, 0.1 * h)
        h = h @ w2[:, :, 0, 0].T + b2
        return jnp.transpose(h, (0, 3, 1, 2))

    if mode == "amplitude":
        mag = process(mag)
    elif mode == "phase":
        pha = process(pha)
    return lax.complex(mag * jnp.cos(pha), mag * jnp.sin(pha))


if __name__ == "__main__":
    N, C, H, W = 2, 4, 16, 16
    key = jax.random.PRNGKey(0)
    k_re, k_im, k_w1, k_b1, k_w2, k_b2 = jax.random.split(key, 6)

    x_re = jax.random.normal(k_re, (N, C, H, W), dtype=jnp.float32)
    x_im = jax.random.normal(k_im, (N, C, H, W), dtype=jnp.float32)

    # deterministic synthetic parameters (Conv2d(nc, nc, 1) weights/biases)
    w1 = 0.3 * jax.random.normal(k_w1, (C, C, 1, 1), dtype=jnp.float32)
    b1 = 0.1 * jax.random.normal(k_b1, (C,), dtype=jnp.float32)
    w2 = 0.3 * jax.random.normal(k_w2, (C, C, 1, 1), dtype=jnp.float32)
    b2 = 0.1 * jax.random.normal(k_b2, (C,), dtype=jnp.float32)

    # run the Pallas kernel (mode='amplitude'; 'phase' kernel is also defined)
    out = fre_block(x_re, x_im, w1, b1, w2, b2, mode="amplitude")
    out = jax.block_until_ready(out)

    ref = ref_fre_block(lax.complex(x_re, x_im), w1, b1, w2, b2, "amplitude")
    ref = jax.block_until_ready(ref)

    assert out.shape == (N, C, H, W) and out.dtype == jnp.complex64
    assert jnp.allclose(out.real, ref.real, atol=1e-4, rtol=1e-4)
    assert jnp.allclose(out.imag, ref.imag, atol=1e-4, rtol=1e-4)

    print("KERNEL_OK")
</pallas_src>

<mosaic_0001>
module attributes {stable_mosaic.version = 11 : i64} {
  func.func @_freblock_amp_kernel(%arg0: i32, %arg1: i32, %arg2: memref<1x4x256xf32, #tpu.memory_space<vmem>>, %arg3: memref<1x4x256xf32, #tpu.memory_space<vmem>>, %arg4: memref<4x4xf32, #tpu.memory_space<vmem>>, %arg5: memref<4x1xf32, #tpu.memory_space<vmem>>, %arg6: memref<4x4xf32, #tpu.memory_space<vmem>>, %arg7: memref<4x1xf32, #tpu.memory_space<vmem>>, %arg8: memref<1x4x256xf32, #tpu.memory_space<vmem>>, %arg9: memref<1x4x256xf32, #tpu.memory_space<vmem>>) attributes {dimension_semantics = [#tpu.dimension_semantics<parallel>, #tpu.dimension_semantics<parallel>], iteration_bounds = array<i64: 2, 1>, scalar_prefetch = 0 : i64, scratch_operands = 0 : i64, tpu.core_type = #tpu.core_type<tc>, window_params = [{transform_indices = @transform_0, window_bounds = array<i64: 1, 4, 256>}, {transform_indices = @transform_1, window_bounds = array<i64: 1, 4, 256>}, {pipeline_mode = #tpu.pipeline_mode<synchronous>, transform_indices = @transform_2, window_bounds = array<i64: 4, 4>}, {pipeline_mode = #tpu.pipeline_mode<synchronous>, transform_indices = @transform_3, window_bounds = array<i64: 4, 1>}, {pipeline_mode = #tpu.pipeline_mode<synchronous>, transform_indices = @transform_4, window_bounds = array<i64: 4, 4>}, {pipeline_mode = #tpu.pipeline_mode<synchronous>, transform_indices = @transform_5, window_bounds = array<i64: 4, 1>}, {transform_indices = @transform_6, window_bounds = array<i64: 1, 4, 256>}, {transform_indices = @transform_7, window_bounds = array<i64: 1, 4, 256>}]} {
    %c0 = arith.constant 0 : index
    %c0_0 = arith.constant 0 : index
    %c0_1 = arith.constant 0 : index
    %0 = vector.load %arg2[%c0, %c0_0, %c0_1] : memref<1x4x256xf32, #tpu.memory_space<vmem>>, vector<1x4x256xf32>
    %1 = vector.shape_cast %0 : vector<1x4x256xf32> to vector<4x256xf32>
    %cst = arith.constant 9.99999993E-9 : f32
    %2 = vector.broadcast %cst : f32 to vector<4x256xf32>
    %3 = arith.addf %1, %2 : vector<4x256xf32>
    %c0_2 = arith.constant 0 : index
    %c0_3 = arith.constant 0 : index
    %c0_4 = arith.constant 0 : index
    %4 = vector.load %arg3[%c0_2, %c0_3, %c0_4] : memref<1x4x256xf32, #tpu.memory_space<vmem>>, vector<1x4x256xf32>
    %5 = vector.shape_cast %4 : vector<1x4x256xf32> to vector<4x256xf32>
    %6 = arith.mulf %3, %3 : vector<4x256xf32>
    %7 = arith.mulf %5, %5 : vector<4x256xf32>
    %8 = arith.addf %6, %7 : vector<4x256xf32>
    %9 = math.rsqrt %8 : vector<4x256xf32>
    %10 = arith.mulf %8, %9 : vector<4x256xf32>
    %c0_5 = arith.constant 0 : index
    %c0_6 = arith.constant 0 : index
    %11 = vector.load %arg4[%c0_5, %c0_6] : memref<4x4xf32, #tpu.memory_space<vmem>>, vector<4x4xf32>
    %cst_7 = arith.constant dense<0.000000e+00> : vector<4x256xf32>
    %12 = tpu.matmul %11, %10, %cst_7 {dimension_numbers = #tpu.dot_dimension_numbers<[1], [0], [0], [1], [0, 0, 1, 1], [], []>} : vector<4x4xf32>, vector<4x256xf32>, vector<4x256xf32> -> vector<4x256xf32>
    %c0_8 = arith.constant 0 : index
    %c0_9 = arith.constant 0 : index
    %13 = vector.load %arg5[%c0_8, %c0_9] : memref<4x1xf32, #tpu.memory_space<vmem>>, vector<4x1xf32>
    %14 = vector.broadcast %13 : vector<4x1xf32> to vector<4x256xf32>
    %15 = arith.addf %12, %14 : vector<4x256xf32>
    %cst_10 = arith.constant 0.000000e+00 : f32
    %16 = vector.broadcast %cst_10 : f32 to vector<4x256xf32>
    %17 = arith.cmpf oge, %15, %16 : vector<4x256xf32>
    %cst_11 = arith.constant 1.000000e-01 : f32
    %18 = vector.broadcast %cst_11 : f32 to vector<4x256xf32>
    %19 = arith.mulf %18, %15 : vector<4x256xf32>
    %20 = arith.select %17, %15, %19 : vector<4x256xi1>, vector<4x256xf32>
    %c0_12 = arith.constant 0 : index
    %c0_13 = arith.constant 0 : index
    %21 = vector.load %arg6[%c0_12, %c0_13] : memref<4x4xf32, #tpu.memory_space<vmem>>, vector<4x4xf32>
    %cst_14 = arith.constant dense<0.000000e+00> : vector<4x256xf32>
    %22 = tpu.matmul %21, %20, %cst_14 {dimension_numbers = #tpu.dot_dimension_numbers<[1], [0], [0], [1], [0, 0, 1, 1], [], []>} : vector<4x4xf32>, vector<4x256xf32>, vector<4x256xf32> -> vector<4x256xf32>
    %c0_15 = arith.constant 0 : index
    %c0_16 = arith.constant 0 : index
    %23 = vector.load %arg7[%c0_15, %c0_16] : memref<4x1xf32, #tpu.memory_space<vmem>>, vector<4x1xf32>
    %24 = vector.broadcast %23 : vector<4x1xf32> to vector<4x256xf32>
    %25 = arith.addf %22, %24 : vector<4x256xf32>
    %26 = arith.mulf %25, %9 : vector<4x256xf32>
    %27 = arith.mulf %26, %3 : vector<4x256xf32>
    %c0_17 = arith.constant 0 : index
    %c0_18 = arith.constant 0 : index
    %c0_19 = arith.constant 0 : index
    %28 = vector.load %arg8[%c0_17, %c0_18, %c0_19] : memref<1x4x256xf32, #tpu.memory_space<vmem>>, vector<1x4x256xf32>
    %29 = vector.shape_cast %28 : vector<1x4x256xf32> to vector<4x256xf32>
    %30 = vector.shape_cast %27 : vector<4x256xf32> to vector<1x4x256xf32>
    tpu.vector_store %arg8[%c0_17, %c0_18, %c0_19], %30 {strides = array<i32>} : memref<1x4x256xf32, #tpu.memory_space<vmem>>, vector<1x4x256xf32>,
    %31 = arith.mulf %26, %5 : vector<4x256xf32>
    %c0_20 = arith.constant 0 : index
    %c0_21 = arith.constant 0 : index
    %c0_22 = arith.constant 0 : index
    %32 = vector.load %arg9[%c0_20, %c0_21, %c0_22] : memref<1x4x256xf32, #tpu.memory_space<vmem>>, vector<1x4x256xf32>
    %33 = vector.shape_cast %32 : vector<1x4x256xf32> to vector<4x256xf32>
    %34 = vector.shape_cast %31 : vector<4x256xf32> to vector<1x4x256xf32>
    tpu.vector_store %arg9[%c0_20, %c0_21, %c0_22], %34 {strides = array<i32>} : memref<1x4x256xf32, #tpu.memory_space<vmem>>, vector<1x4x256xf32>,
    return
  }
  func.func @transform_0(%arg0: i32, %arg1: i32) -> (i32, i32, i32) {
    %c0_i32 = arith.constant 0 : i32
    %c0_i32_0 = arith.constant 0 : i32
    return %arg0, %c0_i32, %arg1 : i32, i32, i32
  }
  func.func @transform_1(%arg0: i32, %arg1: i32) -> (i32, i32, i32) {
    %c0_i32 = arith.constant 0 : i32
    %c0_i32_0 = arith.constant 0 : i32
    return %arg0, %c0_i32, %arg1 : i32, i32, i32
  }
  func.func @transform_2(%arg0: i32, %arg1: i32) -> (i32, i32) {
    %c0_i32 = arith.constant 0 : i32
    %c0_i32_0 = arith.constant 0 : i32
    %c0_i32_1 = arith.constant 0 : i32
    return %c0_i32, %c0_i32_0 : i32, i32
  }
  func.func @transform_3(%arg0: i32, %arg1: i32) -> (i32, i32) {
    %c0_i32 = arith.constant 0 : i32
    %c0_i32_0 = arith.constant 0 : i32
    %c0_i32_1 = arith.constant 0 : i32
    return %c0_i32, %c0_i32_0 : i32, i32
  }
  func.func @transform_4(%arg0: i32, %arg1: i32) -> (i32, i32) {
    %c0_i32 = arith.constant 0 : i32
    %c0_i32_0 = arith.constant 0 : i32
    %c0_i32_1 = arith.constant 0 : i32
    return %c0_i32, %c0_i32_0 : i32, i32
  }
  func.func @transform_5(%arg0: i32, %arg1: i32) -> (i32, i32) {
    %c0_i32 = arith.constant 0 : i32
    %c0_i32_0 = arith.constant 0 : i32
    %c0_i32_1 = arith.constant 0 : i32
    return %c0_i32, %c0_i32_0 : i32, i32
  }
  func.func @transform_6(%arg0: i32, %arg1: i32) -> (i32, i32, i32) {
    %c0_i32 = arith.constant 0 : i32
    %c0_i32_0 = arith.constant 0 : i32
    return %arg0, %c0_i32, %arg1 : i32, i32, i32
  }
  func.func @transform_7(%arg0: i32, %arg1: i32) -> (i32, i32, i32) {
    %c0_i32 = arith.constant 0 : i32
    %c0_i32_0 = arith.constant 0 : i32
    return %arg0, %c0_i32, %arg1 : i32, i32, i32
  }
}

</mosaic_0001>

<llo_original>
// kernel: tpu_custom_call.1
$region0: #{tpu_custom_call.1}
  #allocation0 [shape = 'u32[]', space=smem, size = 0x4, offset = 0x4, fixed_abs, tag = 'smem constant byte address 0x4 - core index']
  #allocation1 [shape = 'u32[144,128]{1,0:T(1,128)}', space=vmem, size = 0x12000, scoped, tag = 'internal scratch']
  %s0 = inlined_call_operand.hbm [shape: f32[2,4,256], index: 0, kind: input, shape index: {}]
  %s1 = inlined_call_operand.hbm [shape: f32[2,4,256], index: 1, kind: input, shape index: {}]
  %s2 = inlined_call_operand.vmem [shape: f32[4,4], index: 2, kind: input, shape index: {}]
  %s3 = inlined_call_operand.vmem [shape: f32[4,1], index: 3, kind: input, shape index: {}]
  %s4 = inlined_call_operand.vmem [shape: f32[4,4], index: 4, kind: input, shape index: {}]
  %s5 = inlined_call_operand.vmem [shape: f32[4,1], index: 5, kind: input, shape index: {}]
  %s6 = inlined_call_operand.hbm [shape: f32[2,4,256], index: 6, kind: output, shape index: {0}]
  %s7 = inlined_call_operand.hbm [shape: f32[2,4,256], index: 7, kind: output, shape index: {1}]
  %8 = xla_tuple %s6, %s7
  %s9 = sld [smem:[#allocation0]]
  $region73: #{tpu_custom_call.1} parent=0
    _
  %s11 = ssub.s32 1, %s9
  %s12 = scalar_select 0, %s11, %s9
  $region1: #{tpu_custom_call.1} parent=0
    #allocation2 [shape = 'u8[8192]{0}', space=vmem, size = 0x2000, scoped, tag = 'input window, operand 0']
    #allocation3 [shape = 's32[2]{0}', space=sflag, size = 0x8, scoped, tag = 'scoped memory for tpu_custom_call.1']
    #allocation4 [shape = 's32[2]{0}', space=sflag, size = 0x8, scoped, tag = 'scoped memory for tpu_custom_call.1']
    #allocation5 [shape = 'u8[8192]{0}', space=vmem, size = 0x2000, scoped, tag = 'input window, operand 1']
    #allocation6 [shape = 's32[2]{0}', space=sflag, size = 0x8, scoped, tag = 'scoped memory for tpu_custom_call.1']
    #allocation7 [shape = 'u8[8192]{0}', space=vmem, size = 0x2000, scoped, tag = 'output window, operand 0']
    #allocation8 [shape = 'u8[8192]{0}', space=vmem, size = 0x2000, scoped, tag = 'output window, operand 1']
    #allocation9 [shape = 's32[2]{0}', space=sflag, size = 0x8, scoped, tag = 'scoped memory for tpu_custom_call.1']
    %13 = vsyncpa [#allocation3], 0
    %s14 = scalar_lea.sflag [#allocation3], 1
    %15 = vsyncpa %s14, 0
    %16 = vsyncpa [#allocation6], 0
    %s17 = scalar_lea.sflag [#allocation6], 1
    %18 = vsyncpa %s17, 0
    %19 = vsyncpa [#allocation4], 0
    %s20 = scalar_lea.sflag [#allocation4], 1
    %21 = vsyncpa %s20, 0
    %22 = vsyncpa [#allocation9], 0
    %s23 = scalar_lea.sflag [#allocation9], 1
    %24 = vsyncpa %s23, 0
    loop: start=0, step=1, limit=4
    $region2: #{tpu_custom_call.1} parent=1 // loop_pre_header
      _
    $region3: #{tpu_custom_call.1} parent=1 // loop_header
      %s26 = sphi 0, %s30
      %p27 = scmp.ge.s32.totalorder %s26, 4
      %s33 = sphi 0, %s45
      %s34 = sphi 0, %s41
      %s35 = sphi 0, %s33
      %s36 = sphi 0, %s34
      %s37 = sphi 0, %s35
      %s38 = sphi 0, %s36
      %s50 = sphi 0, %s52
      %s53 = sphi 0, %s50
      %s54 = sphi 0, %s53
      %s70 = sphi 0, %s54
      %s78 = sphi 0, %s80
      %s81 = sphi 0, %s78
      %s82 = sphi 0, %s81
      %s98 = sphi 0, %s82
      %s102 = sphi 0, %s102
      %s104 = sphi 0, %s102
      %s105 = sphi 0, %s104
      %s119 = sphi 0, %s105
      %s123 = sphi 0, %s123
      %s125 = sphi 0, %s123
      %s126 = sphi 0, %s125
      %s140 = sphi 0, %s126
      %s144 = sphi 0, %s144
      %s146 = sphi 0, %s144
      %s147 = sphi 0, %s146
      %s161 = sphi 0, %s147
      %s165 = sphi 0, %s165
      %s167 = sphi 0, %s165
      %s168 = sphi 0, %s167
      %s182 = sphi 0, %s168
      %s190 = sphi 0, %s192
      %s193 = sphi 0, %s190
      %s194 = sphi 0, %s193
      %s210 = sphi 0, %s194
      %s218 = sphi 0, %s220
      %s221 = sphi 0, %s218
      %s222 = sphi 0, %s221
      %s238 = sphi 0, %s222
    $region4: #{tpu_custom_call.1} parent=1 // loop_header_branch
      %29 = sbr.rel (%p27) target = $region8
    $region5: #{tpu_custom_call.1} parent=1 // loop_body
      %s31 = ssub.s32 %s26, 1
      %s32 = ssub.s32 %s26, 2
      %s39 = sadd.s32 1, %s34
      %p40 = scmp.ge.s32.totalorder %s39, 1
      %s41 = scalar_select %p40, 0, %s39
      %s42 = sadd.s32 1, %s33
      %s43 = scalar_select %p40, %s42, %s33
      %p44 = scmp.ge.s32.totalorder %s43, 2
      %s45 = scalar_select %p44, 0, %s43
      %s46 = ssub.s32 %s33, %s45
      %s47 = ssub.s32 %s34, %s41
      %s48 = sor.u32 %s46, %s47
      %p49 = scmp.eq.s32.totalorder %s48, 0
      %s51 = sadd.s32 %s50, 1
      %s52 = scalar_select %p49, %s50, %s51
      %p55 = pneg %p49
      %p56 = scmp.eq.s32.totalorder %s26, 1
      %p57 = por %p55, %p56
      %p58 = scmp.ne.s32.totalorder %s50, %s53
      %p59 = scmp.eq.s32.totalorder %s26, 0
      %p60 = por %p58, %p59
      %p61 = scmp.ne.s32.totalorder %s50, %s53
      %p62 = scmp.eq.s32.totalorder %s31, 1
      %p63 = por %p61, %p62
      %p64 = scmp.ne.s32.totalorder %s53, %s54
      %p65 = scmp.eq.s32.totalorder %s31, 0
      %p66 = por %p64, %p65
      %p67 = scmp.ne.s32.totalorder %s53, %s54
      %p68 = scmp.eq.s32.totalorder %s32, 1
      %p69 = por %p67, %p68
      %p71 = scmp.ne.s32.totalorder %s54, %s70
      %p72 = scmp.eq.s32.totalorder %s32, 0
      %p73 = por %p71, %p72
      %s74 = ssub.s32 %s33, %s45
      %s75 = ssub.s32 %s34, %s41
      %s76 = sor.u32 %s74, %s75
      %p77 = scmp.eq.s32.totalorder %s76, 0
      %s79 = sadd.s32 %s78, 1
      %s80 = scalar_select %p77, %s78, %s79
      %p83 = pneg %p77
      %p84 = scmp.eq.s32.totalorder %s26, 1
      %p85 = por %p83, %p84
      %p86 = scmp.ne.s32.totalorder %s78, %s81
      %p87 = scmp.eq.s32.totalorder %s26, 0
      %p88 = por %p86, %p87
      %p89 = scmp.ne.s32.totalorder %s78, %s81
      %p90 = scmp.eq.s32.totalorder %s31, 1
      %p91 = por %p89, %p90
      %p92 = scmp.ne.s32.totalorder %s81, %s82
      %p93 = scmp.eq.s32.totalorder %s31, 0
      %p94 = por %p92, %p93
      %p95 = scmp.ne.s32.totalorder %s81, %s82
      %p96 = scmp.eq.s32.totalorder %s32, 1
      %p97 = por %p95, %p96
      %p99 = scmp.ne.s32.totalorder %s82, %s98
      %p100 = scmp.eq.s32.totalorder %s32, 0
      %p101 = por %p99, %p100
      %s103 = sadd.s32 %s102, 1
      %p106 = scmp.eq.s32.totalorder %s26, 1
      %p107 = scmp.ne.s32.totalorder %s102, %s104
      %p108 = scmp.eq.s32.totalorder %s26, 0
      %p109 = por %p107, %p108
      %p110 = scmp.ne.s32.totalorder %s102, %s104
      %p111 = scmp.eq.s32.totalorder %s31, 1
      %p112 = por %p110, %p111
      %p113 = scmp.ne.s32.totalorder %s104, %s105
      %p114 = scmp.eq.s32.totalorder %s31, 0
      %p115 = por %p113, %p114
      %p116 = scmp.ne.s32.totalorder %s104, %s105
      %p117 = scmp.eq.s32.totalorder %s32, 1
      %p118 = por %p116, %p117
      %p120 = scmp.ne.s32.totalorder %s105, %s119
      %p121 = scmp.eq.s32.totalorder %s32, 0
      %p122 = por %p120, %p121
      %s124 = sadd.s32 %s123, 1
      %p127 = scmp.eq.s32.totalorder %s26, 1
      %p128 = scmp.ne.s32.totalorder %s123, %s125
      %p129 = scmp.eq.s32.totalorder %s26, 0
      %p130 = por %p128, %p129
      %p131 = scmp.ne.s32.totalorder %s123, %s125
      %p132 = scmp.eq.s32.totalorder %s31, 1
      %p133 = por %p131, %p132
      %p134 = scmp.ne.s32.totalorder %s125, %s126
      %p135 = scmp.eq.s32.totalorder %s31, 0
      %p136 = por %p134, %p135
      %p137 = scmp.ne.s32.totalorder %s125, %s126
      %p138 = scmp.eq.s32.totalorder %s32, 1
      %p139 = por %p137, %p138
      %p141 = scmp.ne.s32.totalorder %s126, %s140
      %p142 = scmp.eq.s32.totalorder %s32, 0
      %p143 = por %p141, %p142
      %s145 = sadd.s32 %s144, 1
      %p148 = scmp.eq.s32.totalorder %s26, 1
      %p149 = scmp.ne.s32.totalorder %s144, %s146
      %p150 = scmp.eq.s32.totalorder %s26, 0
      %p151 = por %p149, %p150
      %p152 = scmp.ne.s32.totalorder %s144, %s146
      %p153 = scmp.eq.s32.totalorder %s31, 1
      %p154 = por %p152, %p153
      %p155 = scmp.ne.s32.totalorder %s146, %s147
      %p156 = scmp.eq.s32.totalorder %s31, 0
      %p157 = por %p155, %p156
      %p158 = scmp.ne.s32.totalorder %s146, %s147
      %p159 = scmp.eq.s32.totalorder %s32, 1
      %p160 = por %p158, %p159
      %p162 = scmp.ne.s32.totalorder %s147, %s161
      %p163 = scmp.eq.s32.totalorder %s32, 0
      %p164 = por %p162, %p163
      %s166 = sadd.s32 %s165, 1
      %p169 = scmp.eq.s32.totalorder %s26, 1
      %p170 = scmp.ne.s32.totalorder %s165, %s167
      %p171 = scmp.eq.s32.totalorder %s26, 0
      %p172 = por %p170, %p171
      %p173 = scmp.ne.s32.totalorder %s165, %s167
      %p174 = scmp.eq.s32.totalorder %s31, 1
      %p175 = por %p173, %p174
      %p176 = scmp.ne.s32.totalorder %s167, %s168
      %p177 = scmp.eq.s32.totalorder %s31, 0
      %p178 = por %p176, %p177
      %p179 = scmp.ne.s32.totalorder %s167, %s168
      %p180 = scmp.eq.s32.totalorder %s32, 1
      %p181 = por %p179, %p180
      %p183 = scmp.ne.s32.totalorder %s168, %s182
      %p184 = scmp.eq.s32.totalorder %s32, 0
      %p185 = por %p183, %p184
      %s186 = ssub.s32 %s33, %s45
      %s187 = ssub.s32 %s34, %s41
      %s188 = sor.u32 %s186, %s187
      %p189 = scmp.eq.s32.totalorder %s188, 0
      %s191 = sadd.s32 %s190, 1
      %s192 = scalar_select %p189, %s190, %s191
      %p195 = pneg %p189
      %p196 = scmp.eq.s32.totalorder %s26, 1
      %p197 = por %p195, %p196
      %p198 = scmp.ne.s32.totalorder %s190, %s193
      %p199 = scmp.eq.s32.totalorder %s26, 0
      %p200 = por %p198, %p199
      %p201 = scmp.ne.s32.totalorder %s190, %s193
      %p202 = scmp.eq.s32.totalorder %s31, 1
      %p203 = por %p201, %p202
      %p204 = scmp.ne.s32.totalorder %s193, %s194
      %p205 = scmp.eq.s32.totalorder %s31, 0
      %p206 = por %p204, %p205
      %p207 = scmp.ne.s32.totalorder %s193, %s194
      %p208 = scmp.eq.s32.totalorder %s32, 1
      %p209 = por %p207, %p208
      %p211 = scmp.ne.s32.totalorder %s194, %s210
      %p212 = scmp.eq.s32.totalorder %s32, 0
      %p213 = por %p211, %p212
      %s214 = ssub.s32 %s33, %s45
      %s215 = ssub.s32 %s34, %s41
      %s216 = sor.u32 %s214, %s215
      %p217 = scmp.eq.s32.totalorder %s216, 0
      %s219 = sadd.s32 %s218, 1
      %s220 = scalar_select %p217, %s218, %s219
      %p223 = pneg %p217
      %p224 = scmp.eq.s32.totalorder %s26, 1
      %p225 = por %p223, %p224
      %p226 = scmp.ne.s32.totalorder %s218, %s221
      %p227 = scmp.eq.s32.totalorder %s26, 0
      %p228 = por %p226, %p227
      %p229 = scmp.ne.s32.totalorder %s218, %s221
      %p230 = scmp.eq.s32.totalorder %s31, 1
      %p231 = por %p229, %p230
      %p232 = scmp.ne.s32.totalorder %s221, %s222
      %p233 = scmp.eq.s32.totalorder %s31, 0
      %p234 = por %p232, %p233
      %p235 = scmp.ne.s32.totalorder %s221, %s222
      %p236 = scmp.eq.s32.totalorder %s32, 1
      %p237 = por %p235, %p236
      %p239 = scmp.ne.s32.totalorder %s222, %s238
      %p240 = scmp.eq.s32.totalorder %s32, 0
      %p241 = por %p239, %p240
      %p242 = scmp.le.s32.totalorder 1, %s26
      %p243 = scmp.lt.s32.totalorder %s26, 3
      %p244 = pnand %p242, %p243
      %p245 = pneg %p244
      // Predicated region
      $region9: #{tpu_custom_call.1} parent=5 // pred_check
        _
      $region10: #{tpu_custom_call.1} parent=5 // pred_check_branch
        %247 = sbr.rel (%p244) target = $region12
      $region11: #{tpu_custom_call.1} parent=5 // pred_region
        %s248 = ssub.s32 %s26, 1
        // Predicated region
        $region13: #{tpu_custom_call.1} parent=11 // pred_check
          %p249 = pneg %p115
        $region14: #{tpu_custom_call.1} parent=11 // pred_check_branch
          %251 = sbr.rel (%p249) target = $region16
        $region15: #{tpu_custom_call.1} parent=11 // pred_region
          _
        $region16: #{tpu_custom_call.1} parent=11 // pred_fallthru
          _
        // Predicated region
        $region17: #{tpu_custom_call.1} parent=11 // pred_check
          %p252 = pneg %p136
        $region18: #{tpu_custom_call.1} parent=11 // pred_check_branch
          %254 = sbr.rel (%p252) target = $region20
        $region19: #{tpu_custom_call.1} parent=11 // pred_region
          _
        $region20: #{tpu_custom_call.1} parent=11 // pred_fallthru
          _
        // Predicated region
        $region21: #{tpu_custom_call.1} parent=11 // pred_check
          %p255 = pneg %p157
        $region22: #{tpu_custom_call.1} parent=11 // pred_check_branch
          %257 = sbr.rel (%p255) target = $region24
        $region23: #{tpu_custom_call.1} parent=11 // pred_region
          _
        $region24: #{tpu_custom_call.1} parent=11 // pred_fallthru
          _
        // Predicated region
        $region25: #{tpu_custom_call.1} parent=11 // pred_check
          %p258 = pneg %p178
        $region26: #{tpu_custom_call.1} parent=11 // pred_check_branch
          %260 = sbr.rel (%p258) target = $region28
        $region27: #{tpu_custom_call.1} parent=11 // pred_region
          _
        $region28: #{tpu_custom_call.1} parent=11 // pred_fallthru
          _
      $region12: #{tpu_custom_call.1} parent=5 // pred_fallthru
        _
      %p261 = scmp.lt.s32.totalorder %s26, 2
      // Predicated region
      $region29: #{tpu_custom_call.1} parent=5 // pred_check
        %p262 = pneg %p261
      $region30: #{tpu_custom_call.1} parent=5 // pred_check_branch
        %264 = sbr.rel (%p262) target = $region32
      $region31: #{tpu_custom_call.1} parent=5 // pred_region
        // Predicated region
        $region33: #{tpu_custom_call.1} parent=31 // pred_check
          %p265 = pneg %p60
        $region34: #{tpu_custom_call.1} parent=31 // pred_check_branch
          %267 = sbr.rel (%p265) target = $region36
        $region35: #{tpu_custom_call.1} parent=31 // pred_region
          %s268 = sand.u32 %s50, 1
          %s269 = scalar_lea.sflag [#allocation3], %s268
          %s270 = sand.u32 %s50, 1
          %s271 = smul.addr %s270, 8
          %s272 = scalar_lea.vmem [#allocation2], %s271
          %s273 = smul.u32 2, %s34
          %s275 = ssub.s32 128, 128
          %276 = vsyncadd %s269, %s275
          %s277 = smul.addr %s33, 2
          %s278 = sadd.s32 %s273, %s277
          %s279 = smul.addr %s278, 64
          %s280 = scalar_lea.hbm %s0, %s279
          %s282 = sshll.u32 %s272, 4
          %s283 = int_to_ptr.vmem [resolvable:$true] %s282
          %285 = dma.hbm_to_vmem [thread:$0]  %s280, 128, %s283, %s269
        $region36: #{tpu_custom_call.1} parent=31 // pred_fallthru
          _
        // Predicated region
        $region37: #{tpu_custom_call.1} parent=31 // pred_check
          %p286 = pneg %p88
        $region38: #{tpu_custom_call.1} parent=31 // pred_check_branch
          %288 = sbr.rel (%p286) target = $region40
        $region39: #{tpu_custom_call.1} parent=31 // pred_region
          %s289 = sand.u32 %s78, 1
          %s290 = scalar_lea.sflag [#allocation6], %s289
          %s291 = sand.u32 %s78, 1
          %s292 = smul.addr %s291, 8
          %s293 = scalar_lea.vmem [#allocation5], %s292
          %s294 = smul.u32 2, %s34
          %s296 = ssub.s32 128, 128
          %297 = vsyncadd %s290, %s296
          %s298 = smul.addr %s33, 2
          %s299 = sadd.s32 %s294, %s298
          %s300 = smul.addr %s299, 64
          %s301 = scalar_lea.hbm %s1, %s300
          %s303 = sshll.u32 %s293, 4
          %s304 = int_to_ptr.vmem [resolvable:$true] %s303
          %306 = dma.hbm_to_vmem [thread:$0]  %s301, 128, %s304, %s290
        $region40: #{tpu_custom_call.1} parent=31 // pred_fallthru
          _
      $region32: #{tpu_custom_call.1} parent=5 // pred_fallthru
        _
      %p307 = scmp.le.s32.totalorder 1, %s26
      %p308 = scmp.lt.s32.totalorder %s26, 3
      %p309 = pnand %p307, %p308
      %p310 = pneg %p309
      // Predicated region
      $region41: #{tpu_custom_call.1} parent=5 // pred_check
        _
      $region42: #{tpu_custom_call.1} parent=5 // pred_check_branch
        %312 = sbr.rel (%p309) target = $region44
      $region43: #{tpu_custom_call.1} parent=5 // pred_region
        %s313 = ssub.s32 %s26, 1
        %s314 = sand.u32 %s53, 1
        %s315 = scalar_lea.sflag [#allocation3], %s314
        %s316 = sand.u32 %s53, 1
        %s317 = smul.addr %s316, 8
        %s318 = scalar_lea.vmem [#allocation2], %s317
        // Predicated region
        $region45: #{tpu_custom_call.1} parent=43 // pred_check
          %p319 = pneg %p66
        $region46: #{tpu_custom_call.1} parent=43 // pred_check_branch
          %321 = sbr.rel (%p319) target = $region48
        $region47: #{tpu_custom_call.1} parent=43 // pred_region
          %322 = dma.done %s315, 128
        $region48: #{tpu_custom_call.1} parent=43 // pred_fallthru
          _
        %s323 = sand.u32 %s81, 1
        %s324 = scalar_lea.sflag [#allocation6], %s323
        %s325 = sand.u32 %s81, 1
        %s326 = smul.addr %s325, 8
        %s327 = scalar_lea.vmem [#allocation5], %s326
        // Predicated region
        $region49: #{tpu_custom_call.1} parent=43 // pred_check
          %p328 = pneg %p94
        $region50: #{tpu_custom_call.1} parent=43 // pred_check_branch
          %330 = sbr.rel (%p328) target = $region52
        $region51: #{tpu_custom_call.1} parent=43 // pred_region
          %331 = dma.done %s324, 128
        $region52: #{tpu_custom_call.1} parent=43 // pred_fallthru
          _
        %s332 = sand.u32 %s53, 1
        %s333 = scalar_lea.sflag [#allocation3], %s332
        %s334 = sand.u32 %s53, 1
        %s335 = smul.addr %s334, 8
        %s336 = scalar_lea.vmem [#allocation2], %s335
        %p337 = pneg %p66
        %p338 = pneg %p63
        %s339 = sand.u32 %s81, 1
        %s340 = scalar_lea.sflag [#allocation6], %s339
        %s341 = sand.u32 %s81, 1
        %s342 = smul.addr %s341, 8
        %s343 = scalar_lea.vmem [#allocation5], %s342
        %p344 = pneg %p94
        %p345 = pneg %p91
        %p346 = pneg %p115
        %p347 = pneg %p112
        %p348 = pneg %p136
        %p349 = pneg %p133
        %p350 = pneg %p157
        %p351 = pneg %p154
        %p352 = pneg %p178
        %p353 = pneg %p175
        %p354 = pneg %p206
        %p355 = pneg %p203
        %s356 = sand.u32 %s193, 1
        %s357 = scalar_lea.sflag [#allocation4], %s356
        %s358 = sand.u32 %s193, 1
        %s359 = smul.addr %s358, 8
        %s360 = scalar_lea.vmem [#allocation7], %s359
        %p361 = pneg %p234
        %p362 = pneg %p231
        %s363 = sand.u32 %s221, 1
        %s364 = scalar_lea.sflag [#allocation9], %s363
        %s365 = sand.u32 %s221, 1
        %s366 = smul.addr %s365, 8
        %s367 = scalar_lea.vmem [#allocation8], %s366
        %s368 = smul.u32 2, %s36
        %s369 = smul.u32 2, %s36
        %s370 = smul.u32 2, %s36
        %s371 = smul.u32 2, %s36
        %v372 = vld [vmem:[%s318] sm:$0xff]
        %v373 = vadd.f32 %v372, 1e-08
        %v374 = vld [vmem:[%s327] sm:$0xff]
        %v375 = vmul.f32 %v373, %v373
        %v376 = vmul.f32 %v374, %v374
        %v377 = vadd.f32 %v375, %v376
        %v378 = vrsqrt.pop %v377
        %v379 = vmul.f32 %v377, %v378
        %v380 = vld [vmem:[%s2] sm:$0xf]
        %v381 = vld [vmem:[%s3] sm:$0xf]
        %383 = vset.pattern.permute.xlu0 0
        %384 = vperm.xlu0 %383, %v381
        %v385 = vpop.permute.xlu0 %384
        %v388 = vcombine.high %v379, %v379
        %vm389 = vcmask 31744
        %v391 = vsel %vm389, %v380, 0
        %vm393 = vcmask 1043456
        %v394 = vsel %vm393, %v379, 0
        %v396 = vsel %vm393, %v388, 0
        %398 = vmatprep.subr.mxu0 0.0
        %399 = vmatpush1.msra.mxu0 0.0
        %400 = vmatprep.subr.mxu0 0.0
        %401 = vmatpush1.msra.mxu0 0.0
        %402 = vmatprep.subr.mxu0 0.0
        %403 = vmatpush1.msra.mxu0 0.0
        %404 = vmatprep.subr.mxu0 0.0
        %405 = vmatpush1.msra.mxu0 0.0
        %406 = vmatprep.subr.mxu0 0.0
        %407 = vmatpush1.msra.mxu0 0.0
        %408 = vmatprep.subr.mxu0 0.0
        %409 = vmatpush1.msra.mxu0 0.0
        %410 = vmatprep.subr.mxu0 0.0
        %411 = vmatpush1.msra.mxu0 0.0
        %412 = vmatprep.subr.mxu0 0.0
        %413 = vmatpush1.msra.mxu0 0.0
        %414 = vmatprep.subr.mxu0 0.0
        %415 = vmatpush1.msra.mxu0 0.0
        %416 = vmatprep.subr.mxu0 0.0
        %417 = vmatpush1.msra.mxu0 0.0
        %418 = vmatprep.subr.mxu0 0.0
        %419 = vmatpush1.msra.mxu0 0.0
        %420 = vmatprep.subr.mxu0 0.0
        %421 = vmatpush1.msra.mxu0 0.0
        %422 = vmatprep.subr.mxu0 0.0
        %423 = vmatpush1.msra.mxu0 0.0
        %424 = vmatprep.subr.mxu0 0.0
        %425 = vmatpush1.msra.mxu0 0.0
        %426 = vmatprep.subr.mxu0 0.0
        %427 = vmatpush1.msra.mxu0 0.0
        %428 = vmatprep.subr.mxu0 %v396
        %429 = vmatpush1.msra.mxu0 %v394
        %430 = vmatprep.subr.mxu0 0.0
        %431 = vmatpush2.msra.mxu0 0.0
        %432 = vmatprep.subr.mxu0 0.0
        %433 = vmatpush2.msra.mxu0 0.0
        %434 = vmatprep.subr.mxu0 0.0
        %435 = vmatpush2.msra.mxu0 0.0
        %436 = vmatprep.subr.mxu0 0.0
        %437 = vmatpush2.msra.mxu0 0.0
        %438 = vmatprep.subr.mxu0 0.0
        %439 = vmatpush2.msra.mxu0 0.0
        %440 = vmatprep.subr.mxu0 0.0
        %441 = vmatpush2.msra.mxu0 0.0
        %442 = vmatprep.subr.mxu0 0.0
        %443 = vmatpush2.msra.mxu0 0.0
        %444 = vmatprep.subr.mxu0 0.0
        %445 = vmatpush2.msra.mxu0 0.0
        %446 = vmatprep.subr.mxu0 0.0
        %447 = vmatpush2.msra.mxu0 0.0
        %448 = vmatprep.subr.mxu0 0.0
        %449 = vmatpush2.msra.mxu0 0.0
        %450 = vmatprep.subr.mxu0 0.0
        %451 = vmatpush2.msra.mxu0 0.0
        %452 = vmatprep.subr.mxu0 0.0
        %453 = vmatpush2.msra.mxu0 0.0
        %454 = vmatprep.subr.mxu0 0.0
        %455 = vmatpush2.msra.mxu0 0.0
        %456 = vmatprep.subr.mxu0 0.0
        %457 = vmatpush2.msra.mxu0 0.0
        %458 = vmatprep.subr.mxu0 0.0
        %459 = vmatpush2.msra.mxu0 0.0
        %460 = vmatprep.subr.mxu0 0.0
        %461 = vmatpush2.msra.mxu0 0.0
        %462 = vmatprep.mubr.f32.mxu0 0.0
        %463 = vmatmul.mubr.f32.gmra.mxu0 %v391
        %v464 = vpop.f32.mrf.mxu0
        %v465 = vadd.f32 %v385, %v464
        %v466 = vpop.f32.mrf.mxu0
        %v467 = vadd.f32 %v385, %v466
        %468 = vdwg.mxu0
        %vm469 = vcmp.ge.f32.partialorder %v465, 0.0
        %vm470 = vcmp.ge.f32.partialorder %v467, 0.0
        %v471 = vmul.f32 %v465, 0.1
        %v472 = vmul.f32 %v467, 0.1
        %v473 = vsel %vm469, %v465, %v471
        %v474 = vsel %vm470, %v467, %v472
        %v475 = vld [vmem:[%s4] sm:$0xf]
        %v476 = vld [vmem:[%s5] sm:$0xf]
        %478 = vset.pattern.permute.xlu0 0
        %479 = vperm.xlu0 %478, %v476
        %v480 = vpop.permute.xlu0 %479
        %v483 = vsel %vm389, %v475, 0
        %v486 = vsel %vm393, %v473, 0
        %v489 = vsel %vm393, %v474, 0
        %491 = vmatprep.subr.mxu0 0.0
        %492 = vmatpush1.msra.mxu0 0.0
        %493 = vmatprep.subr.mxu0 0.0
        %494 = vmatpush1.msra.mxu0 0.0
        %495 = vmatprep.subr.mxu0 0.0
        %496 = vmatpush1.msra.mxu0 0.0
        %497 = vmatprep.subr.mxu0 0.0
        %498 = vmatpush1.msra.mxu0 0.0
        %499 = vmatprep.subr.mxu0 0.0
        %500 = vmatpush1.msra.mxu0 0.0
        %501 = vmatprep.subr.mxu0 0.0
        %502 = vmatpush1.msra.mxu0 0.0
        %503 = vmatprep.subr.mxu0 0.0
        %504 = vmatpush1.msra.mxu0 0.0
        %505 = vmatprep.subr.mxu0 0.0
        %506 = vmatpush1.msra.mxu0 0.0
        %507 = vmatprep.subr.mxu0 0.0
        %508 = vmatpush1.msra.mxu0 0.0
        %509 = vmatprep.subr.mxu0 0.0
        %510 = vmatpush1.msra.mxu0 0.0
        %511 = vmatprep.subr.mxu0 0.0
        %512 = vmatpush1.msra.mxu0 0.0
        %513 = vmatprep.subr.mxu0 0.0
        %514 = vmatpush1.msra.mxu0 0.0
        %515 = vmatprep.subr.mxu0 0.0
        %516 = vmatpush1.msra.mxu0 0.0
        %517 = vmatprep.subr.mxu0 0.0
        %518 = vmatpush1.msra.mxu0 0.0
        %519 = vmatprep.subr.mxu0 0.0
        %520 = vmatpush1.msra.mxu0 0.0
        %521 = vmatprep.subr.mxu0 %v489
        %522 = vmatpush1.msra.mxu0 %v486
        %523 = vmatprep.subr.mxu0 0.0
        %524 = vmatpush2.msra.mxu0 0.0
        %525 = vmatprep.subr.mxu0 0.0
        %526 = vmatpush2.msra.mxu0 0.0
        %527 = vmatprep.subr.mxu0 0.0
        %528 = vmatpush2.msra.mxu0 0.0
        %529 = vmatprep.subr.mxu0 0.0
        %530 = vmatpush2.msra.mxu0 0.0
        %531 = vmatprep.subr.mxu0 0.0
        %532 = vmatpush2.msra.mxu0 0.0
        %533 = vmatprep.subr.mxu0 0.0
        %534 = vmatpush2.msra.mxu0 0.0
        %535 = vmatprep.subr.mxu0 0.0
        %536 = vmatpush2.msra.mxu0 0.0
        %537 = vmatprep.subr.mxu0 0.0
        %538 = vmatpush2.msra.mxu0 0.0
        %539 = vmatprep.subr.mxu0 0.0
        %540 = vmatpush2.msra.mxu0 0.0
        %541 = vmatprep.subr.mxu0 0.0
        %542 = vmatpush2.msra.mxu0 0.0
        %543 = vmatprep.subr.mxu0 0.0
        %544 = vmatpush2.msra.mxu0 0.0
        %545 = vmatprep.subr.mxu0 0.0
        %546 = vmatpush2.msra.mxu0 0.0
        %547 = vmatprep.subr.mxu0 0.0
        %548 = vmatpush2.msra.mxu0 0.0
        %549 = vmatprep.subr.mxu0 0.0
        %550 = vmatpush2.msra.mxu0 0.0
        %551 = vmatprep.subr.mxu0 0.0
        %552 = vmatpush2.msra.mxu0 0.0
        %553 = vmatprep.subr.mxu0 0.0
        %554 = vmatpush2.msra.mxu0 0.0
        %555 = vmatprep.mubr.f32.mxu0 0.0
        %556 = vmatmul.mubr.f32.gmra.mxu0 %v483
        %v557 = vpop.f32.mrf.mxu0
        %v558 = vadd.f32 %v480, %v557
        %v559 = vpop.f32.mrf.mxu0
        %v560 = vadd.f32 %v480, %v559
        %561 = vdwg.mxu0
        %v563 = vcombine.high %v378, %v378
        %v565 = vmul.f32 %v558, %v378
        %v566 = vmul.f32 %v560, %v563
        %v568 = vcombine.high %v373, %v373
        %v570 = vmul.f32 %v565, %v373
        %v571 = vmul.f32 %v566, %v568
        %v574 = vcombine.low %v570, %v571
        %576 = vst [vmem:[%s360] sm:$0xff] %v574
        %v578 = vcombine.high %v374, %v374
        %v580 = vmul.f32 %v565, %v374
        %v581 = vmul.f32 %v566, %v578
        %v584 = vcombine.low %v580, %v581
        %586 = vst [vmem:[%s367] sm:$0xff] %v584
        %s587 = sand.u32 %s193, 1
        %s588 = scalar_lea.sflag [#allocation4], %s587
        %s589 = sand.u32 %s193, 1
        %s590 = smul.addr %s589, 8
        %s591 = scalar_lea.vmem [#allocation7], %s590
        %s592 = sand.u32 %s221, 1
        %s593 = scalar_lea.sflag [#allocation9], %s592
        %s594 = sand.u32 %s221, 1
        %s595 = smul.addr %s594, 8
        %s596 = scalar_lea.vmem [#allocation8], %s595
        // Predicated region
        $region53: #{tpu_custom_call.1} parent=43 // pred_check
          %p597 = pneg %p203
        $region54: #{tpu_custom_call.1} parent=43 // pred_check_branch
          %599 = sbr.rel (%p597) target = $region56
        $region55: #{tpu_custom_call.1} parent=43 // pred_region
          %s600 = smul.u32 2, %s36
          %s602 = ssub.s32 128, 128
          %603 = vsyncadd %s588, %s602
          %s604 = smul.addr %s35, 2
          %s605 = sadd.s32 %s600, %s604
          %s606 = smul.addr %s605, 64
          %s607 = scalar_lea.hbm %s6, %s606
          %s609 = sshll.u32 %s591, 4
          %s610 = int_to_ptr.vmem [resolvable:$true] %s609
          %612 = dma.vmem_to_hbm [thread:$0]  %s610, 128, %s607, %s588
        $region56: #{tpu_custom_call.1} parent=43 // pred_fallthru
          _
        // Predicated region
        $region57: #{tpu_custom_call.1} parent=43 // pred_check
          %p613 = pneg %p231
        $region58: #{tpu_custom_call.1} parent=43 // pred_check_branch
          %615 = sbr.rel (%p613) target = $region60
        $region59: #{tpu_custom_call.1} parent=43 // pred_region
          %s616 = smul.u32 2, %s36
          %s618 = ssub.s32 128, 128
          %619 = vsyncadd %s593, %s618
          %s620 = smul.addr %s35, 2
          %s621 = sadd.s32 %s616, %s620
          %s622 = smul.addr %s621, 64
          %s623 = scalar_lea.hbm %s7, %s622
          %s625 = sshll.u32 %s596, 4
          %s626 = int_to_ptr.vmem [resolvable:$true] %s625
          %628 = dma.vmem_to_hbm [thread:$0]  %s626, 128, %s623, %s593
        $region60: #{tpu_custom_call.1} parent=43 // pred_fallthru
          _
      $region44: #{tpu_custom_call.1} parent=5 // pred_fallthru
        _
      %p629 = scmp.le.s32.totalorder 2, %s26
      // Predicated region
      $region61: #{tpu_custom_call.1} parent=5 // pred_check
        %p630 = pneg %p629
      $region62: #{tpu_custom_call.1} parent=5 // pred_check_branch
        %632 = sbr.rel (%p630) target = $region64
      $region63: #{tpu_custom_call.1} parent=5 // pred_region
        %s633 = ssub.s32 %s26, 2
        // Predicated region
        $region65: #{tpu_custom_call.1} parent=63 // pred_check
          %p634 = pneg %p209
        $region66: #{tpu_custom_call.1} parent=63 // pred_check_branch
          %636 = sbr.rel (%p634) target = $region68
        $region67: #{tpu_custom_call.1} parent=63 // pred_region
          %s637 = sand.u32 %s194, 1
          %s638 = scalar_lea.sflag [#allocation4], %s637
          %s639 = sand.u32 %s194, 1
          %s640 = smul.addr %s639, 8
          %s641 = scalar_lea.vmem [#allocation7], %s640
          %642 = dma.done %s638, 128
        $region68: #{tpu_custom_call.1} parent=63 // pred_fallthru
          _
        // Predicated region
        $region69: #{tpu_custom_call.1} parent=63 // pred_check
          %p643 = pneg %p237
        $region70: #{tpu_custom_call.1} parent=63 // pred_check_branch
          %645 = sbr.rel (%p643) target = $region72
        $region71: #{tpu_custom_call.1} parent=63 // pred_region
          %s646 = sand.u32 %s222, 1
          %s647 = scalar_lea.sflag [#allocation9], %s646
          %s648 = sand.u32 %s222, 1
          %s649 = smul.addr %s648, 8
          %s650 = scalar_lea.vmem [#allocation8], %s649
          %651 = dma.done %s647, 128
        $region72: #{tpu_custom_call.1} parent=63 // pred_fallthru
          _
      $region64: #{tpu_custom_call.1} parent=5 // pred_fallthru
        _
    $region6: #{tpu_custom_call.1} parent=1 // loop_footer
      %s30 = sadd.s32 1, %s26
    $region7: #{tpu_custom_call.1} parent=1 // loop_footer_branch
      %25 = sbr.rel target = $region3
    $region8: #{tpu_custom_call.1} parent=1 // loop_exit
      _
    %652 = vsyncpa [#allocation3], 1
    %s653 = scalar_lea.sflag [#allocation3], 1
    %654 = vsyncpa %s653, 1
    %655 = vsyncpa [#allocation6], 1
    %s656 = scalar_lea.sflag [#allocation6], 1
    %657 = vsyncpa %s656, 1
    %658 = vsyncpa [#allocation4], 1
    %s659 = scalar_lea.sflag [#allocation4], 1
    %660 = vsyncpa %s659, 1
    %661 = vsyncpa [#allocation9], 1
    %s662 = scalar_lea.sflag [#allocation9], 1
    %663 = vsyncpa %s662, 1

</llo_original>
